<compile_context>
chip_gen: v7x
topology: tpu7x:2x2x1
jax: 0.10.0
libtpu: 0.0.40
codegen_flags: <defaults>
</compile_context>

<pallas_src>
import jax
import jax.numpy as jnp
from jax.experimental import pallas as pl
from jax.experimental.pallas import tpu as pltpu


# ----------------------------- planning helpers -----------------------------

def _round_up(x, m):
    return (x + m - 1) // m * m


def _sublane_multiple(dtype):
    # Sub-32-bit dtypes pack along sublanes: 8 rows for 4B, 16 for 2B, 32 for 1B.
    return max(8, 32 // jnp.dtype(dtype).itemsize)


def _vmem_capacity_bytes():
    try:
        info = pltpu.get_tpu_info()
        cap = getattr(info, "vmem_capacity_bytes", None)
        if cap:
            return int(cap)
    except Exception:
        pass
    return 64 * 1024 * 1024  # conservative fallback (v7x per-TC size)


def _plan(n, c_in, c_out, hw_p, x_dtype, skip_dtype, max_tile=None, max_nb=8):
    """Pick (pixel tile, batch block size, vmem limit), generation aware."""
    vmem = _vmem_capacity_bytes()
    budget = vmem // 3                                   # pipelined-block budget
    vmem_limit = min(vmem * 3 // 4, 96 * 1024 * 1024)    # 96 MiB on 128-MiB parts,
                                                         # 48 MiB on v7x (64 MiB/TC)

    x_bytes = jnp.dtype(x_dtype).itemsize
    s_bytes = jnp.dtype(skip_dtype).itemsize
    # Bytes per lane per batch element, with the channel dims rounded up to the
    # real sublane tile (x block + out block + skip block).
    per_lane = (_round_up(c_out, _sublane_multiple(x_dtype)) * x_bytes * 2
                + _round_up(c_in, _sublane_multiple(skip_dtype)) * s_bytes)

    max_lanes = max(128, budget // (2 * per_lane))       # x2: double-buffered
    tile = min(hw_p, max_lanes // 128 * 128)
    tile = max(tile, 128)
    if max_tile is not None:
        tile = min(tile, max(128, max_tile // 128 * 128))

    nb = 1
    if tile == hw_p and n > 1:
        # Whole pixel axis fits in one block: fold several batch elements per
        # grid step so each ~0.35us step moves a useful amount of data.
        step_bytes = per_lane * tile
        target = 2 * 1024 * 1024
        for d in range(2, min(n, max_nb) + 1):
            if n % d == 0 and 2 * d * step_bytes <= budget:
                nb = d
                if nb * step_bytes >= target:
                    break
    return tile, nb, vmem_limit


# --------------------------------- kernels ----------------------------------

def _make_kernel(nb, c_out, c_in, use_vpu):
    if use_vpu:
        # Tiny channel counts: unrolled broadcast-FMA on the VPU.  The folded
        # (c_out, c_in) weight lives in SMEM and is read as scalars, so the MXU
        # (and its push/pop latency) stays completely out of the per-tile path.
        def kernel(x_ref, skip_ref, w_ref, o_ref):
            x = x_ref[...]                                # (nb, c_out, T)
            skip = skip_ref[...].astype(jnp.float32)      # (nb, c_in, T)
            for co in range(c_out):
                acc = x[:, co, :].astype(jnp.float32)     # (nb, T)
                for ci in range(c_in):
                    acc = acc + w_ref[co, ci] * skip[:, ci, :]
                o_ref[:, co:co + 1, :] = acc[:, None, :].astype(o_ref.dtype)
    else:
        # Larger channel counts: MXU matmul with the weight resident in VMEM.
        # Operands keep their native dtype (bf16 stays bf16); f32 accumulate;
        # only the residual add is done in f32.
        def kernel(x_ref, skip_ref, w_ref, o_ref):
            w = w_ref[...]                                # (c_out, c_in)
            for bi in range(nb):
                conv = jnp.dot(w, skip_ref[bi],
                               preferred_element_type=jnp.float32)
                o_ref[bi] = (x_ref[bi].astype(jnp.float32) + conv).astype(o_ref.dtype)
    return kernel


# --------------------------------- wrapper -----------------------------------

def skip_connection_pallas(x_nchw, skip_nchw, weight_oi11, scale_factor=0.1,
                           max_tile=None, donate_x=False):
    """x: (N, C_out, H, W), skip: (N, C_in, H, W), weight: (C_out, C_in, 1, 1)."""
    n, c_out, h, w = x_nchw.shape
    _, c_in, _, _ = skip_nchw.shape
    assert skip_nchw.shape[0] == n
    assert weight_oi11.shape[:2] == (c_out, c_in)
    hw = h * w
    hw_p = _round_up(hw, 128)   # lane-dense (unmasked) stores even for odd H*W

    # Free reshapes: NCHW is contiguous in (N, C, H*W).
    x_3d = x_nchw.reshape(n, c_out, hw)
    skip_3d = skip_nchw.reshape(n, c_in, hw)
    if hw_p != hw:
        pad = ((0, 0), (0, 0), (0, hw_p - hw))
        x_3d = jnp.pad(x_3d, pad)
        skip_3d = jnp.pad(skip_3d, pad)

    # Fold the scale factor into the weight once (f32 accumulate).
    w_f32 = weight_oi11.reshape(c_out, c_in).astype(jnp.float32) * scale_factor

    use_vpu = (c_in <= 8 and c_out <= 8)
    if use_vpu:
        w_arg = w_f32                                       # f32 scalars in SMEM
        w_spec = pl.BlockSpec(memory_space=pltpu.MemorySpace.SMEM)
    else:
        w_dtype = skip_3d.dtype if skip_3d.dtype == jnp.bfloat16 else jnp.float32
        w_arg = w_f32.astype(w_dtype)                       # resident VMEM block
        w_spec = pl.BlockSpec((c_out, c_in), lambda t, b: (0, 0))

    tile, nb, vmem_limit = _plan(n, c_in, c_out, hw_p,
                                 x_3d.dtype, skip_3d.dtype, max_tile)

    # Pixel-tile axis FIRST: with small N, megacore on v7x splits the long axis.
    grid = (pl.cdiv(hw_p, tile), n // nb)
    kernel = _make_kernel(nb, c_out, c_in, use_vpu)

    io_aliases = {0: 0} if donate_x else {}

    out_3d = pl.pallas_call(
        kernel,
        out_shape=jax.ShapeDtypeStruct((n, c_out, hw_p), x_3d.dtype),
        grid_spec=pltpu.PrefetchScalarGridSpec(
            num_scalar_prefetch=0,
            grid=grid,
            in_specs=[
                pl.BlockSpec((nb, c_out, tile), lambda t, b: (b, 0, t)),
                pl.BlockSpec((nb, c_in, tile), lambda t, b: (b, 0, t)),
                w_spec,
            ],
            out_specs=pl.BlockSpec((nb, c_out, tile), lambda t, b: (b, 0, t)),
        ),
        compiler_params=pltpu.CompilerParams(
            # No reduction axis: both grid axes independent -> megacore sharding.
            dimension_semantics=("parallel", "parallel"),
            vmem_limit_bytes=vmem_limit,
        ),
        input_output_aliases=io_aliases,
    )(x_3d, skip_3d, w_arg)

    if hw_p != hw:
        out_3d = out_3d[:, :, :hw]
    return out_3d.reshape(n, c_out, h, w)


# -------------------------------- reference ----------------------------------

def skip_connection_ref(x_nchw, skip_nchw, weight_oi11, scale_factor=0.1):
    """Pure-JAX reference (matches PyTorch Conv2d k=1, bias=False), f32 math."""
    conv = jax.lax.conv_general_dilated(
        skip_nchw.astype(jnp.float32), weight_oi11.astype(jnp.float32),
        window_strides=(1, 1), padding="VALID",
        dimension_numbers=("NCHW", "OIHW", "NCHW"),
    )
    return x_nchw.astype(jnp.float32) + scale_factor * conv


# ----------------------------------- main -------------------------------------

if __name__ == "__main__":
    SCALE = 0.1

    def run_case(n, c_in, c_out, h, w, dtype, case_key, max_tile=None,
                 atol=1e-5, rtol=1e-5):
        k_x, k_s, k_w = jax.random.split(case_key, 3)
        x = jax.random.normal(k_x, (n, c_out, h, w), dtype=jnp.float32).astype(dtype)
        skip = jax.random.normal(k_s, (n, c_in, h, w), dtype=jnp.float32).astype(dtype)
        weight = (jax.random.normal(k_w, (c_out, c_in, 1, 1), dtype=jnp.float32)
                  * 0.1).astype(dtype)

        out = jax.block_until_ready(
            skip_connection_pallas(x, skip, weight, SCALE, max_tile=max_tile))
        ref = skip_connection_ref(x, skip, weight, SCALE)
        assert out.shape == (n, c_out, h, w)
        err = jnp.max(jnp.abs(out.astype(jnp.float32) - ref))
        assert jnp.allclose(out.astype(jnp.float32), ref, atol=atol, rtol=rtol), (
            f"max abs err {err}")

    keys = jax.random.split(jax.random.PRNGKey(0), 5)
    # 1) Module-implied shapes: tiny channels -> VPU/SMEM path, batch folded per step.
    run_case(2, 4, 4, 16, 16, jnp.float32, keys[0])
    # 2) C_in != C_out, forced 128-lane pixel tile -> multi-step pipelined VPU path.
    run_case(2, 4, 8, 16, 16, jnp.float32, keys[1], max_tile=128)
    # 3) Larger channel counts -> MXU path with resident weight block.
    run_case(2, 16, 32, 16, 16, jnp.float32, keys[2])
    # 4) bf16 activations/weight -> bf16 MXU operands, f32 accumulate/residual.
    run_case(2, 16, 32, 16, 16, jnp.bfloat16, keys[3], atol=1e-1, rtol=1e-1)
    # 5) Non-multiple-of-128 spatial size -> lane-padding path.
    run_case(2, 4, 4, 10, 10, jnp.float32, keys[4])

    print("KERNEL_OK")
</pallas_src>

<mosaic_0001>
module attributes {stable_mosaic.version = 11 : i64} {
  func.func @kernel(%arg0: i32, %arg1: i32, %arg2: memref<2x4x256xf32, #tpu.memory_space<vmem>>, %arg3: memref<2x4x256xf32, #tpu.memory_space<vmem>>, %arg4: memref<4x4xf32, #tpu.memory_space<smem>>, %arg5: memref<2x4x256xf32, #tpu.memory_space<vmem>>) attributes {dimension_semantics = [#tpu.dimension_semantics<parallel>, #tpu.dimension_semantics<parallel>], iteration_bounds = array<i64: 1, 1>, scalar_prefetch = 0 : i64, scratch_operands = 0 : i64, tpu.core_type = #tpu.core_type<tc>, window_params = [{transform_indices = @transform_0, window_bounds = array<i64: 2, 4, 256>}, {transform_indices = @transform_1, window_bounds = array<i64: 2, 4, 256>}, {transform_indices = @transform_2, window_bounds = array<i64: 4, 4>}, {transform_indices = @transform_3, window_bounds = array<i64: 2, 4, 256>}]} {
    %c0 = arith.constant 0 : index
    %c0_0 = arith.constant 0 : index
    %c0_1 = arith.constant 0 : index
    %0 = vector.load %arg2[%c0, %c0_0, %c0_1] : memref<2x4x256xf32, #tpu.memory_space<vmem>>, vector<2x4x256xf32>
    %c0_2 = arith.constant 0 : index
    %c0_3 = arith.constant 0 : index
    %c0_4 = arith.constant 0 : index
    %1 = vector.load %arg3[%c0_2, %c0_3, %c0_4] : memref<2x4x256xf32, #tpu.memory_space<vmem>>, vector<2x4x256xf32>
    %2 = vector.extract_strided_slice %0 {offsets = [0, 0, 0], sizes = [2, 1, 256], strides = [1, 1, 1]} : vector<2x4x256xf32> to vector<2x1x256xf32>
    %3 = vector.shape_cast %2 : vector<2x1x256xf32> to vector<2x256xf32>
    %c0_5 = arith.constant 0 : index
    %c0_6 = arith.constant 0 : index
    %4 = memref.load %arg4[%c0_5, %c0_6] : memref<4x4xf32, #tpu.memory_space<smem>>
    %5 = vector.extract_strided_slice %1 {offsets = [0, 0, 0], sizes = [2, 1, 256], strides = [1, 1, 1]} : vector<2x4x256xf32> to vector<2x1x256xf32>
    %6 = vector.shape_cast %5 : vector<2x1x256xf32> to vector<2x256xf32>
    %7 = vector.broadcast %4 : f32 to vector<2x256xf32>
    %8 = arith.mulf %7, %6 : vector<2x256xf32>
    %9 = arith.addf %3, %8 : vector<2x256xf32>
    %c0_7 = arith.constant 0 : index
    %c1 = arith.constant 1 : index
    %10 = memref.load %arg4[%c0_7, %c1] : memref<4x4xf32, #tpu.memory_space<smem>>
    %11 = vector.extract_strided_slice %1 {offsets = [0, 1, 0], sizes = [2, 1, 256], strides = [1, 1, 1]} : vector<2x4x256xf32> to vector<2x1x256xf32>
    %12 = vector.shape_cast %11 : vector<2x1x256xf32> to vector<2x256xf32>
    %13 = vector.broadcast %10 : f32 to vector<2x256xf32>
    %14 = arith.mulf %13, %12 : vector<2x256xf32>
    %15 = arith.addf %9, %14 : vector<2x256xf32>
    %c0_8 = arith.constant 0 : index
    %c2 = arith.constant 2 : index
    %16 = memref.load %arg4[%c0_8, %c2] : memref<4x4xf32, #tpu.memory_space<smem>>
    %17 = vector.extract_strided_slice %1 {offsets = [0, 2, 0], sizes = [2, 1, 256], strides = [1, 1, 1]} : vector<2x4x256xf32> to vector<2x1x256xf32>
    %18 = vector.shape_cast %17 : vector<2x1x256xf32> to vector<2x256xf32>
    %19 = vector.broadcast %16 : f32 to vector<2x256xf32>
    %20 = arith.mulf %19, %18 : vector<2x256xf32>
    %21 = arith.addf %15, %20 : vector<2x256xf32>
    %c0_9 = arith.constant 0 : index
    %c3 = arith.constant 3 : index
    %22 = memref.load %arg4[%c0_9, %c3] : memref<4x4xf32, #tpu.memory_space<smem>>
    %23 = vector.extract_strided_slice %1 {offsets = [0, 3, 0], sizes = [2, 1, 256], strides = [1, 1, 1]} : vector<2x4x256xf32> to vector<2x1x256xf32>
    %24 = vector.shape_cast %23 : vector<2x1x256xf32> to vector<2x256xf32>
    %25 = vector.broadcast %22 : f32 to vector<2x256xf32>
    %26 = arith.mulf %25, %24 : vector<2x256xf32>
    %27 = arith.addf %21, %26 : vector<2x256xf32>
    %28 = vector.shape_cast %27 : vector<2x256xf32> to vector<2x1x256xf32>
    %c0_10 = arith.constant 0 : index
    %c0_11 = arith.constant 0 : index
    %c0_12 = arith.constant 0 : index
    %29 = vector.load %arg5[%c0_10, %c0_11, %c0_12] : memref<2x4x256xf32, #tpu.memory_space<vmem>>, vector<2x1x256xf32>
    tpu.vector_store %arg5[%c0_10, %c0_11, %c0_12], %28 {strides = array<i32>} : memref<2x4x256xf32, #tpu.memory_space<vmem>>, vector<2x1x256xf32>,
    %30 = vector.extract_strided_slice %0 {offsets = [0, 1, 0], sizes = [2, 1, 256], strides = [1, 1, 1]} : vector<2x4x256xf32> to vector<2x1x256xf32>
    %31 = vector.shape_cast %30 : vector<2x1x256xf32> to vector<2x256xf32>
    %c1_13 = arith.constant 1 : index
    %c0_14 = arith.constant 0 : index
    %32 = memref.load %arg4[%c1_13, %c0_14] : memref<4x4xf32, #tpu.memory_space<smem>>
    %33 = vector.extract_strided_slice %1 {offsets = [0, 0, 0], sizes = [2, 1, 256], strides = [1, 1, 1]} : vector<2x4x256xf32> to vector<2x1x256xf32>
    %34 = vector.shape_cast %33 : vector<2x1x256xf32> to vector<2x256xf32>
    %35 = vector.broadcast %32 : f32 to vector<2x256xf32>
    %36 = arith.mulf %35, %34 : vector<2x256xf32>
    %37 = arith.addf %31, %36 : vector<2x256xf32>
    %c1_15 = arith.constant 1 : index
    %c1_16 = arith.constant 1 : index
    %38 = memref.load %arg4[%c1_15, %c1_16] : memref<4x4xf32, #tpu.memory_space<smem>>
    %39 = vector.extract_strided_slice %1 {offsets = [0, 1, 0], sizes = [2, 1, 256], strides = [1, 1, 1]} : vector<2x4x256xf32> to vector<2x1x256xf32>
    %40 = vector.shape_cast %39 : vector<2x1x256xf32> to vector<2x256xf32>
    %41 = vector.broadcast %38 : f32 to vector<2x256xf32>
    %42 = arith.mulf %41, %40 : vector<2x256xf32>
    %43 = arith.addf %37, %42 : vector<2x256xf32>
    %c1_17 = arith.constant 1 : index
    %c2_18 = arith.constant 2 : index
    %44 = memref.load %arg4[%c1_17, %c2_18] : memref<4x4xf32, #tpu.memory_space<smem>>
    %45 = vector.extract_strided_slice %1 {offsets = [0, 2, 0], sizes = [2, 1, 256], strides = [1, 1, 1]} : vector<2x4x256xf32> to vector<2x1x256xf32>
    %46 = vector.shape_cast %45 : vector<2x1x256xf32> to vector<2x256xf32>
    %47 = vector.broadcast %44 : f32 to vector<2x256xf32>
    %48 = arith.mulf %47, %46 : vector<2x256xf32>
    %49 = arith.addf %43, %48 : vector<2x256xf32>
    %c1_19 = arith.constant 1 : index
    %c3_20 = arith.constant 3 : index
    %50 = memref.load %arg4[%c1_19, %c3_20] : memref<4x4xf32, #tpu.memory_space<smem>>
    %51 = vector.extract_strided_slice %1 {offsets = [0, 3, 0], sizes = [2, 1, 256], strides = [1, 1, 1]} : vector<2x4x256xf32> to vector<2x1x256xf32>
    %52 = vector.shape_cast %51 : vector<2x1x256xf32> to vector<2x256xf32>
    %53 = vector.broadcast %50 : f32 to vector<2x256xf32>
    %54 = arith.mulf %53, %52 : vector<2x256xf32>
    %55 = arith.addf %49, %54 : vector<2x256xf32>
    %56 = vector.shape_cast %55 : vector<2x256xf32> to vector<2x1x256xf32>
    %c0_21 = arith.constant 0 : index
    %c1_22 = arith.constant 1 : index
    %c0_23 = arith.constant 0 : index
    %57 = vector.load %arg5[%c0_21, %c1_22, %c0_23] : memref<2x4x256xf32, #tpu.memory_space<vmem>>, vector<2x1x256xf32>
    tpu.vector_store %arg5[%c0_21, %c1_22, %c0_23], %56 {strides = array<i32>} : memref<2x4x256xf32, #tpu.memory_space<vmem>>, vector<2x1x256xf32>,
    %58 = vector.extract_strided_slice %0 {offsets = [0, 2, 0], sizes = [2, 1, 256], strides = [1, 1, 1]} : vector<2x4x256xf32> to vector<2x1x256xf32>
    %59 = vector.shape_cast %58 : vector<2x1x256xf32> to vector<2x256xf32>
    %c2_24 = arith.constant 2 : index
    %c0_25 = arith.constant 0 : index
    %60 = memref.load %arg4[%c2_24, %c0_25] : memref<4x4xf32, #tpu.memory_space<smem>>
    %61 = vector.extract_strided_slice %1 {offsets = [0, 0, 0], sizes = [2, 1, 256], strides = [1, 1, 1]} : vector<2x4x256xf32> to vector<2x1x256xf32>
    %62 = vector.shape_cast %61 : vector<2x1x256xf32> to vector<2x256xf32>
    %63 = vector.broadcast %60 : f32 to vector<2x256xf32>
    %64 = arith.mulf %63, %62 : vector<2x256xf32>
    %65 = arith.addf %59, %64 : vector<2x256xf32>
    %c2_26 = arith.constant 2 : index
    %c1_27 = arith.constant 1 : index
    %66 = memref.load %arg4[%c2_26, %c1_27] : memref<4x4xf32, #tpu.memory_space<smem>>
    %67 = vector.extract_strided_slice %1 {offsets = [0, 1, 0], sizes = [2, 1, 256], strides = [1, 1, 1]} : vector<2x4x256xf32> to vector<2x1x256xf32>
    %68 = vector.shape_cast %67 : vector<2x1x256xf32> to vector<2x256xf32>
    %69 = vector.broadcast %66 : f32 to vector<2x256xf32>
    %70 = arith.mulf %69, %68 : vector<2x256xf32>
    %71 = arith.addf %65, %70 : vector<2x256xf32>
    %c2_28 = arith.constant 2 : index
    %c2_29 = arith.constant 2 : index
    %72 = memref.load %arg4[%c2_28, %c2_29] : memref<4x4xf32, #tpu.memory_space<smem>>
    %73 = vector.extract_strided_slice %1 {offsets = [0, 2, 0], sizes = [2, 1, 256], strides = [1, 1, 1]} : vector<2x4x256xf32> to vector<2x1x256xf32>
    %74 = vector.shape_cast %73 : vector<2x1x256xf32> to vector<2x256xf32>
    %75 = vector.broadcast %72 : f32 to vector<2x256xf32>
    %76 = arith.mulf %75, %74 : vector<2x256xf32>
    %77 = arith.addf %71, %76 : vector<2x256xf32>
    %c2_30 = arith.constant 2 : index
    %c3_31 = arith.constant 3 : index
    %78 = memref.load %arg4[%c2_30, %c3_31] : memref<4x4xf32, #tpu.memory_space<smem>>
    %79 = vector.extract_strided_slice %1 {offsets = [0, 3, 0], sizes = [2, 1, 256], strides = [1, 1, 1]} : vector<2x4x256xf32> to vector<2x1x256xf32>
    %80 = vector.shape_cast %79 : vector<2x1x256xf32> to vector<2x256xf32>
    %81 = vector.broadcast %78 : f32 to vector<2x256xf32>
    %82 = arith.mulf %81, %80 : vector<2x256xf32>
    %83 = arith.addf %77, %82 : vector<2x256xf32>
    %84 = vector.shape_cast %83 : vector<2x256xf32> to vector<2x1x256xf32>
    %c0_32 = arith.constant 0 : index
    %c2_33 = arith.constant 2 : index
    %c0_34 = arith.constant 0 : index
    %85 = vector.load %arg5[%c0_32, %c2_33, %c0_34] : memref<2x4x256xf32, #tpu.memory_space<vmem>>, vector<2x1x256xf32>
    tpu.vector_store %arg5[%c0_32, %c2_33, %c0_34], %84 {strides = array<i32>} : memref<2x4x256xf32, #tpu.memory_space<vmem>>, vector<2x1x256xf32>,
    %86 = vector.extract_strided_slice %0 {offsets = [0, 3, 0], sizes = [2, 1, 256], strides = [1, 1, 1]} : vector<2x4x256xf32> to vector<2x1x256xf32>
    %87 = vector.shape_cast %86 : vector<2x1x256xf32> to vector<2x256xf32>
    %c3_35 = arith.constant 3 : index
    %c0_36 = arith.constant 0 : index
    %88 = memref.load %arg4[%c3_35, %c0_36] : memref<4x4xf32, #tpu.memory_space<smem>>
    %89 = vector.extract_strided_slice %1 {offsets = [0, 0, 0], sizes = [2, 1, 256], strides = [1, 1, 1]} : vector<2x4x256xf32> to vector<2x1x256xf32>
    %90 = vector.shape_cast %89 : vector<2x1x256xf32> to vector<2x256xf32>
    %91 = vector.broadcast %88 : f32 to vector<2x256xf32>
    %92 = arith.mulf %91, %90 : vector<2x256xf32>
    %93 = arith.addf %87, %92 : vector<2x256xf32>
    %c3_37 = arith.constant 3 : index
    %c1_38 = arith.constant 1 : index
    %94 = memref.load %arg4[%c3_37, %c1_38] : memref<4x4xf32, #tpu.memory_space<smem>>
    %95 = vector.extract_strided_slice %1 {offsets = [0, 1, 0], sizes = [2, 1, 256], strides = [1, 1, 1]} : vector<2x4x256xf32> to vector<2x1x256xf32>
    %96 = vector.shape_cast %95 : vector<2x1x256xf32> to vector<2x256xf32>
    %97 = vector.broadcast %94 : f32 to vector<2x256xf32>
    %98 = arith.mulf %97, %96 : vector<2x256xf32>
    %99 = arith.addf %93, %98 : vector<2x256xf32>
    %c3_39 = arith.constant 3 : index
    %c2_40 = arith.constant 2 : index
    %100 = memref.load %arg4[%c3_39, %c2_40] : memref<4x4xf32, #tpu.memory_space<smem>>
    %101 = vector.extract_strided_slice %1 {offsets = [0, 2, 0], sizes = [2, 1, 256], strides = [1, 1, 1]} : vector<2x4x256xf32> to vector<2x1x256xf32>
    %102 = vector.shape_cast %101 : vector<2x1x256xf32> to vector<2x256xf32>
    %103 = vector.broadcast %100 : f32 to vector<2x256xf32>
    %104 = arith.mulf %103, %102 : vector<2x256xf32>
    %105 = arith.addf %99, %104 : vector<2x256xf32>
    %c3_41 = arith.constant 3 : index
    %c3_42 = arith.constant 3 : index
    %106 = memref.load %arg4[%c3_41, %c3_42] : memref<4x4xf32, #tpu.memory_space<smem>>
    %107 = vector.extract_strided_slice %1 {offsets = [0, 3, 0], sizes = [2, 1, 256], strides = [1, 1, 1]} : vector<2x4x256xf32> to vector<2x1x256xf32>
    %108 = vector.shape_cast %107 : vector<2x1x256xf32> to vector<2x256xf32>
    %109 = vector.broadcast %106 : f32 to vector<2x256xf32>
    %110 = arith.mulf %109, %108 : vector<2x256xf32>
    %111 = arith.addf %105, %110 : vector<2x256xf32>
    %112 = vector.shape_cast %111 : vector<2x256xf32> to vector<2x1x256xf32>
    %c0_43 = arith.constant 0 : index
    %c3_44 = arith.constant 3 : index
    %c0_45 = arith.constant 0 : index
    %113 = vector.load %arg5[%c0_43, %c3_44, %c0_45] : memref<2x4x256xf32, #tpu.memory_space<vmem>>, vector<2x1x256xf32>
    tpu.vector_store %arg5[%c0_43, %c3_44, %c0_45], %112 {strides = array<i32>} : memref<2x4x256xf32, #tpu.memory_space<vmem>>, vector<2x1x256xf32>,
    return
  }
  func.func @transform_0(%arg0: i32, %arg1: i32) -> (i32, i32, i32) {
    %c0_i32 = arith.constant 0 : i32
    %c0_i32_0 = arith.constant 0 : i32
    return %arg1, %c0_i32, %arg0 : i32, i32, i32
  }
  func.func @transform_1(%arg0: i32, %arg1: i32) -> (i32, i32, i32) {
    %c0_i32 = arith.constant 0 : i32
    %c0_i32_0 = arith.constant 0 : i32
    return %arg1, %c0_i32, %arg0 : i32, i32, i32
  }
  func.func @transform_2(%arg0: i32, %arg1: i32) -> (i32, i32) {
    %c0_i32 = arith.constant 0 : i32
    %c0_i32_0 = arith.constant 0 : i32
    %c0_i32_1 = arith.constant 0 : i32
    return %c0_i32, %c0_i32_0 : i32, i32
  }
  func.func @transform_3(%arg0: i32, %arg1: i32) -> (i32, i32, i32) {
    %c0_i32 = arith.constant 0 : i32
    %c0_i32_0 = arith.constant 0 : i32
    return %arg1, %c0_i32, %arg0 : i32, i32, i32
  }
}

</mosaic_0001>

<llo_original>
// kernel: tpu_custom_call.1
$region0: #{tpu_custom_call.1}
  #allocation0 [shape = 'u32[]', space=smem, size = 0x4, offset = 0x4, fixed_abs, tag = 'smem constant byte address 0x4 - core index']
  #allocation1 [shape = 'u32[144,128]{1,0:T(1,128)}', space=vmem, size = 0x12000, scoped, tag = 'internal scratch']
  %s0 = inlined_call_operand.hbm [shape: f32[2,4,256], index: 0, kind: input, shape index: {}]
  %s1 = inlined_call_operand.hbm [shape: f32[2,4,256], index: 1, kind: input, shape index: {}]
  %s2 = inlined_call_operand.vmem [shape: f32[4,4], index: 2, kind: input, shape index: {}]
  %s3 = inlined_call_operand.hbm [shape: f32[2,4,256], index: 3, kind: output, shape index: {}]
  %s4 = sld [smem:[#allocation0]]
  $region34: #{tpu_custom_call.1} parent=0
    _
  %s6 = ssub.s32 1, %s4
  %s7 = scalar_select 0, %s6, %s4
  $region1: #{tpu_custom_call.1} parent=0
    #allocation2 [shape = 'u8[8192]{0}', space=vmem, size = 0x2000, scoped, tag = 'input window, operand 0, single buffered']
    #allocation3 [shape = 's32[1]{0}', space=sflag, size = 0x4, scoped, tag = 'scoped memory for tpu_custom_call.1']
    #allocation4 [shape = 's32[1]{0}', space=sflag, size = 0x4, scoped, tag = 'scoped memory for tpu_custom_call.1']
    #allocation5 [shape = 's32[1]{0}', space=sflag, size = 0x4, scoped, tag = 'scoped memory for tpu_custom_call.1']
    #allocation6 [shape = 'u8[8192]{0}', space=vmem, size = 0x2000, scoped, tag = 'input window, operand 1, single buffered']
    #allocation7 [shape = 's32[1]{0}', space=sflag, size = 0x4, scoped, tag = 'scoped memory for tpu_custom_call.1']
    #allocation8 [shape = 'u8[2048]{0}', space=smem, size = 0x800, scoped, tag = 'input window, operand 2, single buffered']
    #allocation9 [shape = 'u8[8192]{0}', space=vmem, size = 0x2000, scoped, tag = 'output window, operand 0, single buffered']
    %8 = vsyncpa [#allocation3], 0
    %9 = vsyncpa [#allocation7], 0
    %10 = vsyncpa [#allocation5], 0
    %11 = vsyncpa [#allocation4], 0
    // Predicated region
    $region2: #{tpu_custom_call.1} parent=1 // pred_check
      _
    $region3: #{tpu_custom_call.1} parent=1 // pred_check_branch
      %13 = sbr.rel (0) target = $region5
    $region4: #{tpu_custom_call.1} parent=1 // pred_region
      %s15 = ssub.s32 256, 256
      %16 = vsyncadd [#allocation3], %s15
      %s17 = sshll.u32 [#allocation2], 4
      %s18 = int_to_ptr.vmem [resolvable:$true] %s17
      %23 = dma.hbm_to_vmem [thread:$0]  %s0, 256, %s18, [#allocation3], 128, 128, 8
    $region5: #{tpu_custom_call.1} parent=1 // pred_fallthru
      _
    // Predicated region
    $region6: #{tpu_custom_call.1} parent=1 // pred_check
      _
    $region7: #{tpu_custom_call.1} parent=1 // pred_check_branch
      %25 = sbr.rel (0) target = $region9
    $region8: #{tpu_custom_call.1} parent=1 // pred_region
      %s27 = ssub.s32 256, 256
      %28 = vsyncadd [#allocation7], %s27
      %s29 = sshll.u32 [#allocation6], 4
      %s30 = int_to_ptr.vmem [resolvable:$true] %s29
      %35 = dma.hbm_to_vmem [thread:$0]  %s1, 256, %s30, [#allocation7], 128, 128, 8
    $region9: #{tpu_custom_call.1} parent=1 // pred_fallthru
      _
    // Predicated region
    $region10: #{tpu_custom_call.1} parent=1 // pred_check
      _
    $region11: #{tpu_custom_call.1} parent=1 // pred_check_branch
      %37 = sbr.rel (0) target = $region13
    $region12: #{tpu_custom_call.1} parent=1 // pred_region
      %s39 = ssub.s32 64, 64
      %40 = vsyncadd [#allocation5], %s39
      %s42 = sshll.u32 %s2, 4
      %s43 = int_to_ptr.vmem [resolvable:$true] %s42
      %45 = dma.vmem_to_smem %s43, 64, [#allocation8], [#allocation5]
    $region13: #{tpu_custom_call.1} parent=1 // pred_fallthru
      _
    // Predicated region
    $region14: #{tpu_custom_call.1} parent=1 // pred_check
      _
    $region15: #{tpu_custom_call.1} parent=1 // pred_check_branch
      %47 = sbr.rel (0) target = $region17
    $region16: #{tpu_custom_call.1} parent=1 // pred_region
      %48 = dma.done [#allocation3], 256
    $region17: #{tpu_custom_call.1} parent=1 // pred_fallthru
      _
    // Predicated region
    $region18: #{tpu_custom_call.1} parent=1 // pred_check
      _
    $region19: #{tpu_custom_call.1} parent=1 // pred_check_branch
      %50 = sbr.rel (0) target = $region21
    $region20: #{tpu_custom_call.1} parent=1 // pred_region
      %51 = dma.done [#allocation7], 256
    $region21: #{tpu_custom_call.1} parent=1 // pred_fallthru
      _
    // Predicated region
    $region22: #{tpu_custom_call.1} parent=1 // pred_check
      _
    $region23: #{tpu_custom_call.1} parent=1 // pred_check_branch
      %53 = sbr.rel (0) target = $region25
    $region24: #{tpu_custom_call.1} parent=1 // pred_region
      %54 = dma.done [#allocation5], 64
    $region25: #{tpu_custom_call.1} parent=1 // pred_fallthru
      _
    %55 = sfence
    %v56 = vld [vmem:[#allocation2] sm:$0xff]
    %v57 = vld [vmem:[#allocation2 + $0x8] sm:$0xff]
    %v58 = vld [vmem:[#allocation6] sm:$0xff]
    %v59 = vld [vmem:[#allocation6 + $0x8] sm:$0xff]
    %s60 = sld [smem:[#allocation8]]
    %v61 = vstv %s60
    %v62 = vmul.f32 %v61, %v58
    %v63 = vmul.f32 %v61, %v59
    %v64 = vadd.f32 %v56, %v62
    %v65 = vadd.f32 %v57, %v63
    %s66 = sld [smem:[#allocation8 + $0x1]]
    %v67 = vstv %s66
    %v68 = vmul.f32 %v67, %v58
    %v69 = vmul.f32 %v67, %v59
    %v72 = vrot.slane %v68, 5
    %v73 = vrot.slane %v72, 4
    %v74 = vrot.slane %v69, 5
    %v75 = vrot.slane %v74, 4
    %v78 = vadd.f32 %v64, %v73
    %v79 = vadd.f32 %v65, %v75
    %s80 = sld [smem:[#allocation8 + $0x2]]
    %v81 = vstv %s80
    %v82 = vmul.f32 %v81, %v58
    %v83 = vmul.f32 %v81, %v59
    %v86 = vrot.slane %v82, 6
    %v87 = vrot.slane %v86, 4
    %v88 = vrot.slane %v83, 6
    %v89 = vrot.slane %v88, 4
    %v92 = vadd.f32 %v78, %v87
    %v93 = vadd.f32 %v79, %v89
    %s94 = sld [smem:[#allocation8 + $0x3]]
    %v95 = vstv %s94
    %v96 = vmul.f32 %v95, %v58
    %v97 = vmul.f32 %v95, %v59
    %v100 = vrot.slane %v96, 7
    %v101 = vrot.slane %v100, 4
    %v102 = vrot.slane %v97, 7
    %v103 = vrot.slane %v102, 4
    %v106 = vadd.f32 %v92, %v101
    %v107 = vadd.f32 %v93, %v103
    %v111 = vunpack.c.l.s4 1966171168
    %v112 = vunpack.c.0.s8 %v111
    %v113 = vlaneseq
    %v114 = vshrl.u32 %v113, 7
    %v115 = vsub.s32 %v112, %v114
    %v116 = vrot.slane %v106, %v115
    %v118 = vunpack.c.l.s4 1966171168
    %v119 = vunpack.c.0.s8 %v118
    %v120 = vlaneseq
    %v121 = vshrl.u32 %v120, 7
    %v122 = vsub.s32 %v119, %v121
    %v123 = vrot.slane %v116, %v122
    %v125 = vunpack.c.l.s4 1966171168
    %v126 = vunpack.c.0.s8 %v125
    %v127 = vlaneseq
    %v128 = vshrl.u32 %v127, 7
    %v129 = vsub.s32 %v126, %v128
    %v130 = vrot.slane %v107, %v129
    %v132 = vunpack.c.l.s4 1966171168
    %v133 = vunpack.c.0.s8 %v132
    %v134 = vlaneseq
    %v135 = vshrl.u32 %v134, 7
    %v136 = vsub.s32 %v133, %v135
    %v137 = vrot.slane %v130, %v136
    %v140 = vlaneseq
    %vm141 = vcmp.ge.s32.totalorder %v140, 0
    %vm142 = vcmp.lt.s32.totalorder %v140, 256
    %vm143 = vmand %vm141, %vm142
    %144 = vst.msk [vmem:[#allocation9] ss:$4 sm:$0x3] %vm143, %v123
    %s145 = scalar_lea.vmem [#allocation9], 8
    %146 = vst.msk [vmem:[%s145] ss:$4 sm:$0x3] %vm143, %v137
    %s147 = sld [smem:[#allocation8 + $0x80]]
    %v148 = vstv %s147
    %v149 = vmul.f32 %v148, %v58
    %v150 = vmul.f32 %v148, %v59
    %v153 = vrot.slane %v149, 7
    %v154 = vrot.slane %v150, 7
    %v157 = vadd.f32 %v56, %v153
    %v158 = vadd.f32 %v57, %v154
    %s159 = sld [smem:[#allocation8 + $0x81]]
    %v160 = vstv %s159
    %v161 = vmul.f32 %v160, %v58
    %v162 = vmul.f32 %v160, %v59
    %v163 = vadd.f32 %v157, %v161
    %v164 = vadd.f32 %v158, %v162
    %s165 = sld [smem:[#allocation8 + $0x82]]
    %v166 = vstv %s165
    %v167 = vmul.f32 %v166, %v58
    %v168 = vmul.f32 %v166, %v59
    %v171 = vrot.slane %v167, 5
    %v172 = vrot.slane %v171, 4
    %v173 = vrot.slane %v168, 5
    %v174 = vrot.slane %v173, 4
    %v177 = vadd.f32 %v163, %v172
    %v178 = vadd.f32 %v164, %v174
    %s179 = sld [smem:[#allocation8 + $0x83]]
    %v180 = vstv %s179
    %v181 = vmul.f32 %v180, %v58
    %v182 = vmul.f32 %v180, %v59
    %v185 = vrot.slane %v181, 6
    %v186 = vrot.slane %v185, 4
    %v187 = vrot.slane %v182, 6
    %v188 = vrot.slane %v187, 4
    %v191 = vadd.f32 %v177, %v186
    %v192 = vadd.f32 %v178, %v188
    %v196 = vunpack.c.l.s4 1966171168
    %v197 = vunpack.c.0.s8 %v196
    %v198 = vlaneseq
    %v199 = vshrl.u32 %v198, 7
    %v200 = vsub.s32 %v197, %v199
    %v201 = vrot.slane %v191, %v200
    %v202 = vcombine.high %v201, %v201
    %v204 = vunpack.c.l.s4 1966171168
    %v205 = vunpack.c.0.s8 %v204
    %v206 = vlaneseq
    %v207 = vshrl.u32 %v206, 7
    %v208 = vsub.s32 %v205, %v207
    %v209 = vrot.slane %v202, %v208
    %v211 = vunpack.c.l.s4 1966171168
    %v212 = vunpack.c.0.s8 %v211
    %v213 = vlaneseq
    %v214 = vshrl.u32 %v213, 7
    %v215 = vsub.s32 %v212, %v214
    %v216 = vrot.slane %v192, %v215
    %v217 = vcombine.high %v216, %v216
    %v219 = vunpack.c.l.s4 1966171168
    %v220 = vunpack.c.0.s8 %v219
    %v221 = vlaneseq
    %v222 = vshrl.u32 %v221, 7
    %v223 = vsub.s32 %v220, %v222
    %v224 = vrot.slane %v217, %v223
    %s227 = scalar_lea.vmem [#allocation9], 1
    %228 = vst.msk [vmem:[%s227] ss:$4 sm:$0x3] %vm143, %v209
    %s229 = scalar_lea.vmem [#allocation9], 9
    %230 = vst.msk [vmem:[%s229] ss:$4 sm:$0x3] %vm143, %v224
    %s231 = sld [smem:[#allocation8 + $0x100]]
    %v232 = vstv %s231
    %v233 = vmul.f32 %v232, %v58
    %v234 = vmul.f32 %v232, %v59
    %v237 = vrot.slane %v233, 6
    %v238 = vrot.slane %v234, 6
    %v241 = vadd.f32 %v56, %v237
    %v242 = vadd.f32 %v57, %v238
    %s243 = sld [smem:[#allocation8 + $0x101]]
    %v244 = vstv %s243
    %v245 = vmul.f32 %v244, %v58
    %v246 = vmul.f32 %v244, %v59
    %v249 = vrot.slane %v245, 7
    %v250 = vrot.slane %v246, 7
    %v253 = vadd.f32 %v241, %v249
    %v254 = vadd.f32 %v242, %v250
    %s255 = sld [smem:[#allocation8 + $0x102]]
    %v256 = vstv %s255
    %v257 = vmul.f32 %v256, %v58
    %v258 = vmul.f32 %v256, %v59
    %v259 = vadd.f32 %v253, %v257
    %v260 = vadd.f32 %v254, %v258
    %s261 = sld [smem:[#allocation8 + $0x103]]
    %v262 = vstv %s261
    %v263 = vmul.f32 %v262, %v58
    %v264 = vmul.f32 %v262, %v59
    %v267 = vrot.slane %v263, 5
    %v268 = vrot.slane %v267, 4
    %v269 = vrot.slane %v264, 5
    %v270 = vrot.slane %v269, 4
    %v273 = vadd.f32 %v259, %v268
    %v274 = vadd.f32 %v260, %v270
    %v278 = vunpack.c.l.s4 1966171168
    %v279 = vunpack.c.0.s8 %v278
    %v280 = vlaneseq
    %v281 = vshrl.u32 %v280, 7
    %v282 = vsub.s32 %v279, %v281
    %v283 = vrot.slane %v273, %v282
    %v285 = vunpack.c.l.s4 1966171168
    %v286 = vunpack.c.0.s8 %v285
    %v287 = vlaneseq
    %v288 = vshrl.u32 %v287, 7
    %v289 = vsub.s32 %v286, %v288
    %v290 = vrot.slane %v283, %v289
    %v291 = vcombine.high %v290, %v290
    %v293 = vunpack.c.l.s4 1966171168
    %v294 = vunpack.c.0.s8 %v293
    %v295 = vlaneseq
    %v296 = vshrl.u32 %v295, 7
    %v297 = vsub.s32 %v294, %v296
    %v298 = vrot.slane %v274, %v297
    %v300 = vunpack.c.l.s4 1966171168
    %v301 = vunpack.c.0.s8 %v300
    %v302 = vlaneseq
    %v303 = vshrl.u32 %v302, 7
    %v304 = vsub.s32 %v301, %v303
    %v305 = vrot.slane %v298, %v304
    %v306 = vcombine.high %v305, %v305
    %s309 = scalar_lea.vmem [#allocation9], 2
    %310 = vst.msk [vmem:[%s309] ss:$4 sm:$0x3] %vm143, %v291
    %s311 = scalar_lea.vmem [#allocation9], 10
    %312 = vst.msk [vmem:[%s311] ss:$4 sm:$0x3] %vm143, %v306
    %s313 = sld [smem:[#allocation8 + $0x180]]
    %v314 = vstv %s313
    %v315 = vmul.f32 %v314, %v58
    %v316 = vmul.f32 %v314, %v59
    %v319 = vrot.slane %v315, 5
    %v320 = vrot.slane %v316, 5
    %v323 = vadd.f32 %v56, %v319
    %v324 = vadd.f32 %v57, %v320
    %s325 = sld [smem:[#allocation8 + $0x181]]
    %v326 = vstv %s325
    %v327 = vmul.f32 %v326, %v58
    %v328 = vmul.f32 %v326, %v59
    %v331 = vrot.slane %v327, 6
    %v332 = vrot.slane %v328, 6
    %v335 = vadd.f32 %v323, %v331
    %v336 = vadd.f32 %v324, %v332
    %s337 = sld [smem:[#allocation8 + $0x182]]
    %v338 = vstv %s337
    %v339 = vmul.f32 %v338, %v58
    %v340 = vmul.f32 %v338, %v59
    %v343 = vrot.slane %v339, 7
    %v344 = vrot.slane %v340, 7
    %v347 = vadd.f32 %v335, %v343
    %v348 = vadd.f32 %v336, %v344
    %s349 = sld [smem:[#allocation8 + $0x183]]
    %v350 = vstv %s349
    %v351 = vmul.f32 %v350, %v58
    %v352 = vmul.f32 %v350, %v59
    %v353 = vadd.f32 %v347, %v351
    %v354 = vadd.f32 %v348, %v352
    %v358 = vunpack.c.l.s4 1966171168
    %v359 = vunpack.c.0.s8 %v358
    %v360 = vlaneseq
    %v361 = vshrl.u32 %v360, 7
    %v362 = vsub.s32 %v359, %v361
    %v363 = vrot.slane %v353, %v362
    %v364 = vcombine.high %v363, %v363
    %v366 = vunpack.c.l.s4 1966171168
    %v367 = vunpack.c.0.s8 %v366
    %v368 = vlaneseq
    %v369 = vshrl.u32 %v368, 7
    %v370 = vsub.s32 %v367, %v369
    %v371 = vrot.slane %v364, %v370
    %v372 = vcombine.high %v371, %v371
    %v374 = vunpack.c.l.s4 1966171168
    %v375 = vunpack.c.0.s8 %v374
    %v376 = vlaneseq
    %v377 = vshrl.u32 %v376, 7
    %v378 = vsub.s32 %v375, %v377
    %v379 = vrot.slane %v354, %v378
    %v380 = vcombine.high %v379, %v379
    %v382 = vunpack.c.l.s4 1966171168
    %v383 = vunpack.c.0.s8 %v382
    %v384 = vlaneseq
    %v385 = vshrl.u32 %v384, 7
    %v386 = vsub.s32 %v383, %v385
    %v387 = vrot.slane %v380, %v386
    %v388 = vcombine.high %v387, %v387
    %s391 = scalar_lea.vmem [#allocation9], 3
    %392 = vst.msk [vmem:[%s391] ss:$4 sm:$0x3] %vm143, %v372
    %s393 = scalar_lea.vmem [#allocation9], 11
    %394 = vst.msk [vmem:[%s393] ss:$4 sm:$0x3] %vm143, %v388
    // Predicated region
    $region26: #{tpu_custom_call.1} parent=1 // pred_check
      _
    $region27: #{tpu_custom_call.1} parent=1 // pred_check_branch
      %396 = sbr.rel (0) target = $region29
    $region28: #{tpu_custom_call.1} parent=1 // pred_region
      %s398 = ssub.s32 256, 256
      %399 = vsyncadd [#allocation4], %s398
      %s400 = sshll.u32 [#allocation9], 4
      %s401 = int_to_ptr.vmem [resolvable:$true] %s400
      %406 = dma.vmem_to_hbm [thread:$0]  %s401, 256, %s3, [#allocation4], 128, 128, 8
    $region29: #{tpu_custom_call.1} parent=1 // pred_fallthru
      _
    // Predicated region
    $region30: #{tpu_custom_call.1} parent=1 // pred_check
      _
    $region31: #{tpu_custom_call.1} parent=1 // pred_check_branch
      %408 = sbr.rel (0) target = $region33
    $region32: #{tpu_custom_call.1} parent=1 // pred_region
      %409 = dma.done [#allocation4], 256
    $region33: #{tpu_custom_call.1} parent=1 // pred_fallthru
      _
    %410 = vsyncpa [#allocation3], 1
    %411 = vsyncpa [#allocation7], 1
    %412 = vsyncpa [#allocation4], 1
    %413 = vsyncpa [#allocation5], 1

</llo_original>
